<compile_context>
chip_gen: v7x
topology: tpu7x:2x2x1
jax: 0.10.0
libtpu: 0.0.40
codegen_flags: <defaults>
</compile_context>

<pallas_src>
import jax
import jax.numpy as jnp
from jax.experimental import pallas as pl
from jax.experimental.pallas import tpu as pltpu


def _llama3_hidden_dim(hidden_dim: int, multiple_of: int, ffn_dim_multiplier) -> int:
    hidden_dim = int(2 * hidden_dim / 3)
    if ffn_dim_multiplier is not None:
        hidden_dim = int(ffn_dim_multiplier * hidden_dim)
    hidden_dim = multiple_of * ((hidden_dim + multiple_of - 1) // multiple_of)
    return hidden_dim


def _round_up(x: int, m: int) -> int:
    return (x + m - 1) // m * m


def _device_tile_config():
    """Per-generation (tm, th, vmem_limit_bytes) defaults."""
    kind = ""
    try:
        kind = jax.devices()[0].device_kind.lower()
    except Exception:
        pass
    mib = 1024 * 1024
    if "v7" in kind:
        # 64 MiB VMEM per TC: smaller weight tiles, leave compiler headroom.
        return 512, 256, 56 * mib
    if "v6" in kind:
        # 128 MiB VMEM, ~918 TF/s vs ~1.4 TB/s: needs big token tiles.
        return 512, 512, 100 * mib
    # v5e / v5p / unknown: already compute-bound near tm=256.
    return 256, 512, 64 * mib


# -----------------------------------------------------------------------------
# One-time weight preparation (hoisted out of the forward path).
# -----------------------------------------------------------------------------
def prepare_ffn_weights(w1_t, w3_t, w2_t, *, th=None):
    """Pad, cast to bf16 and fuse w1/w3 into a k-major streamed layout.

    w1_t, w3_t: [D, H]   (= nn.Linear weight transposed)
    w2_t:       [H, D]
    Returns (w13, w2k):
      w13: [nk, D, 2*th]  block k = [w1 cols of H-tile k | w3 cols of H-tile k]
      w2k: [nk, th, D]
    """
    D, H = w1_t.shape
    if th is None:
        _, th, _ = _device_tile_config()
    th = min(th, _round_up(H, 128))
    assert th % 128 == 0
    H_pad = _round_up(H, th)
    nk = H_pad // th

    # Zero-padded hidden columns contribute silu(0)*0 == 0 -> exact.
    w1p = jnp.pad(w1_t, ((0, 0), (0, H_pad - H))).astype(jnp.bfloat16)
    w3p = jnp.pad(w3_t, ((0, 0), (0, H_pad - H))).astype(jnp.bfloat16)
    w2p = jnp.pad(w2_t, ((0, H_pad - H), (0, 0))).astype(jnp.bfloat16)

    w13 = jnp.concatenate(
        [
            jnp.transpose(w1p.reshape(D, nk, th), (1, 0, 2)),
            jnp.transpose(w3p.reshape(D, nk, th), (1, 0, 2)),
        ],
        axis=-1,
    )  # (nk, D, 2*th), contiguous per k -> one contiguous DMA per step
    w2k = w2p.reshape(nk, th, D)
    return w13, w2k


# -----------------------------------------------------------------------------
# Kernel.
# -----------------------------------------------------------------------------
def ffn_kernel(x_ref, w13_ref, w2_ref, o_ref, acc_ref):
    # x_ref:   (tm, D)     bf16
    # w13_ref: (D, 2*th)   bf16  (k-th H-tile of fused [w1 | w3], leading dim squeezed)
    # w2_ref:  (th, D)     bf16  (k-th H-tile of w2, leading dim squeezed)
    # o_ref:   (tm, D)     out dtype
    # acc_ref: (tm, D)     f32 accumulator, persists across the H grid axis
    k = pl.program_id(1)
    th = w2_ref.shape[0]

    # Fused up-projection: one MXU matmul, f32 accumulation.
    g = jnp.dot(x_ref[...], w13_ref[...], preferred_element_type=jnp.float32)
    h1 = g[:, :th]            # static, lane-aligned slices (th % 128 == 0)
    h3 = g[:, th:]

    # SwiGLU gate in f32; cast to bf16 only for the down-projection MXU op.
    gate = (h1 * jax.nn.sigmoid(h1) * h3).astype(w2_ref.dtype)
    partial = jnp.dot(gate, w2_ref[...], preferred_element_type=jnp.float32)

    @pl.when(k == 0)
    def _():
        acc_ref[...] = partial          # no separate zero-init pass

    @pl.when(k > 0)
    def _():
        acc_ref[...] += partial

    @pl.when(k == pl.num_programs(1) - 1)
    def _():
        o_ref[...] = acc_ref[...].astype(o_ref.dtype)


# -----------------------------------------------------------------------------
# Forward wrapper (activations only; weights are pre-prepared).
# -----------------------------------------------------------------------------
def feed_forward(x2d, w13, w2k, *, tm=None, vmem_limit_bytes=None, out_dtype=None):
    """SwiGLU FFN forward.

    x2d:  [T, D]            activations (any float dtype)
    w13:  [nk, D, 2*th]     from prepare_ffn_weights
    w2k:  [nk, th, D]       from prepare_ffn_weights
    Returns [T, D] in `out_dtype` (defaults to x2d.dtype).
    """
    T, D = x2d.shape
    nk, th, D2 = w2k.shape
    assert D2 == D and w13.shape == (nk, D, 2 * th)

    if out_dtype is None:
        out_dtype = x2d.dtype

    d_tm, _, d_vmem = _device_tile_config()
    if tm is None:
        tm = d_tm
    if vmem_limit_bytes is None:
        vmem_limit_bytes = d_vmem

    # Shrink the token tile to the (padded) problem if it is small.
    tm = min(tm, _round_up(T, 128))
    assert tm % 8 == 0 and D % 128 == 0

    T_pad = _round_up(T, tm)
    xb = jnp.pad(x2d, ((0, T_pad - T), (0, 0))).astype(jnp.bfloat16)

    num_token_tiles = T_pad // tm
    flops = 6 * T_pad * D * (nk * th)               # 3 GEMMs of 2*T*D*H
    bytes_accessed = (
        T_pad * D * 2                               # x (bf16), read once
        + num_token_tiles * (w13.size + w2k.size) * 2   # weights re-streamed per token tile
        + T_pad * D * jnp.dtype(out_dtype).itemsize     # output
    )

    out = pl.pallas_call(
        ffn_kernel,
        out_shape=jax.ShapeDtypeStruct((T_pad, D), out_dtype),
        grid=(num_token_tiles, nk),
        in_specs=[
            pl.BlockSpec((tm, D), lambda i, k: (i, 0)),             # x tile
            pl.BlockSpec((None, D, 2 * th), lambda i, k: (k, 0, 0)),  # fused w1/w3 (contiguous)
            pl.BlockSpec((None, th, D), lambda i, k: (k, 0, 0)),      # w2 slice (contiguous)
        ],
        out_specs=pl.BlockSpec((tm, D), lambda i, k: (i, 0)),
        scratch_shapes=[pltpu.VMEM((tm, D), jnp.float32)],
        compiler_params=pltpu.CompilerParams(
            dimension_semantics=("parallel", "arbitrary"),
            vmem_limit_bytes=vmem_limit_bytes,
        ),
        cost_estimate=pl.CostEstimate(
            flops=flops,
            transcendentals=T_pad * nk * th,
            bytes_accessed=bytes_accessed,
        ),
    )(xb, w13, w2k)

    return out[:T]


# -----------------------------------------------------------------------------
# References.
# -----------------------------------------------------------------------------
def feed_forward_ref_f32(x2d, w1_t, w3_t, w2_t):
    h1 = x2d @ w1_t
    h3 = x2d @ w3_t
    return (jax.nn.silu(h1) * h3) @ w2_t


def feed_forward_ref_bf16(x2d, w1_t, w3_t, w2_t):
    xb = x2d.astype(jnp.bfloat16)
    h1 = jnp.dot(xb, w1_t.astype(jnp.bfloat16), preferred_element_type=jnp.float32)
    h3 = jnp.dot(xb, w3_t.astype(jnp.bfloat16), preferred_element_type=jnp.float32)
    gate = (h1 * jax.nn.sigmoid(h1) * h3).astype(jnp.bfloat16)
    return jnp.dot(gate, w2_t.astype(jnp.bfloat16), preferred_element_type=jnp.float32)


if __name__ == "__main__":
    # Module hyperparameters (small but TPU-tile friendly).
    in_out_dim = 128
    base_hidden = 4 * in_out_dim          # 512 — "4x" as in the original Transformer
    multiple_of = 256
    ffn_dim_multiplier = None
    hidden_dim = _llama3_hidden_dim(base_hidden, multiple_of, ffn_dim_multiplier)  # 512

    batch, seq = 2, 8
    key = jax.random.PRNGKey(0)
    kx, k1, k2, k3 = jax.random.split(key, 4)

    # PyTorch convention: x is [batch, seq, in_out_dim]; nn.Linear weight is
    # [out_features, in_features].
    x = jax.random.normal(kx, (batch, seq, in_out_dim), dtype=jnp.float32)
    w1 = jax.random.normal(k1, (hidden_dim, in_out_dim), dtype=jnp.float32) * 0.02
    w2 = jax.random.normal(k2, (in_out_dim, hidden_dim), dtype=jnp.float32) * 0.02
    w3 = jax.random.normal(k3, (hidden_dim, in_out_dim), dtype=jnp.float32) * 0.02

    # Pre-transpose to [in, out] so the kernel does plain x @ W.
    w1_t, w2_t, w3_t = w1.T, w2.T, w3.T

    # One-time weight prep (model-load time).  th=256 here so the toy run
    # exercises the H-streaming accumulator path (nk=2).
    w13, w2k = prepare_ffn_weights(w1_t, w3_t, w2_t, th=256)
    w13, w2k = jax.block_until_ready((w13, w2k))

    x2d = x.reshape(batch * seq, in_out_dim)
    out2d = feed_forward(x2d, w13, w2k)
    out = out2d.reshape(batch, seq, in_out_dim)
    jax.block_until_ready(out)

    # Correctness: tight check vs a bf16-matched reference, loose check vs f32.
    ref_bf16 = feed_forward_ref_bf16(x2d, w1_t, w3_t, w2_t).reshape(batch, seq, in_out_dim)
    ref_f32 = feed_forward_ref_f32(x2d, w1_t, w3_t, w2_t).reshape(batch, seq, in_out_dim)
    assert jnp.allclose(out.astype(jnp.float32), ref_bf16, atol=1e-3, rtol=1e-3), \
        "mismatch vs bf16-matched reference"
    assert jnp.allclose(out.astype(jnp.float32), ref_f32, atol=5e-3, rtol=5e-2), \
        "mismatch vs f32 reference"

    print("KERNEL_OK")
</pallas_src>

<mosaic_0001>
module attributes {stable_mosaic.version = 11 : i64} {
  func.func @ffn_kernel(%arg0: i32, %arg1: i32, %arg2: memref<128x128xbf16, #tpu.memory_space<vmem>>, %arg3: memref<1x128x512xbf16, #tpu.memory_space<vmem>>, %arg4: memref<1x256x128xbf16, #tpu.memory_space<vmem>>, %arg5: memref<128x128xf32, #tpu.memory_space<vmem>>, %arg6: memref<128x128xf32, #tpu.memory_space<vmem>>) attributes {dimension_semantics = [#tpu.dimension_semantics<parallel>, #tpu.dimension_semantics<arbitrary>], iteration_bounds = array<i64: 1, 2>, scalar_prefetch = 0 : i64, scratch_operands = 1 : i64, tpu.core_type = #tpu.core_type<tc>, window_params = [{transform_indices = @transform_0, window_bounds = array<i64: 128, 128>}, {transform_indices = @transform_1, window_bounds = array<i64: 1, 128, 512>}, {transform_indices = @transform_2, window_bounds = array<i64: 1, 256, 128>}, {transform_indices = @transform_3, window_bounds = array<i64: 128, 128>}]} {
    %c0 = arith.constant 0 : index
    %c0_0 = arith.constant 0 : index
    %0 = vector.load %arg2[%c0, %c0_0] : memref<128x128xbf16, #tpu.memory_space<vmem>>, vector<128x128xbf16>
    %c0_1 = arith.constant 0 : index
    %c0_2 = arith.constant 0 : index
    %c0_3 = arith.constant 0 : index
    %1 = vector.load %arg3[%c0_1, %c0_2, %c0_3] : memref<1x128x512xbf16, #tpu.memory_space<vmem>>, vector<1x128x512xbf16>
    %2 = vector.shape_cast %1 : vector<1x128x512xbf16> to vector<128x512xbf16>
    %cst = arith.constant dense<0.000000e+00> : vector<128x512xf32>
    %3 = tpu.matmul %0, %2, %cst {dimension_numbers = #tpu.dot_dimension_numbers<[1], [0], [0], [1], [0, 0, 1, 1], [], []>} : vector<128x128xbf16>, vector<128x512xbf16>, vector<128x512xf32> -> vector<128x512xf32>
    %4 = vector.extract_strided_slice %3 {offsets = [0, 0], sizes = [128, 256], strides = [1, 1]} : vector<128x512xf32> to vector<128x256xf32>
    %5 = vector.extract_strided_slice %3 {offsets = [0, 256], sizes = [128, 256], strides = [1, 1]} : vector<128x512xf32> to vector<128x256xf32>
    %6 = arith.negf %4 : vector<128x256xf32>
    %7 = math.exp %6 : vector<128x256xf32>
    %cst_4 = arith.constant 1.000000e+00 : f32
    %8 = vector.broadcast %cst_4 : f32 to vector<128x256xf32>
    %9 = arith.addf %8, %7 : vector<128x256xf32>
    %10 = arith.divf %8, %9 : vector<128x256xf32>
    %11 = arith.mulf %4, %10 : vector<128x256xf32>
    %12 = arith.mulf %11, %5 : vector<128x256xf32>
    %13 = arith.truncf %12 : vector<128x256xf32> to vector<128x256xbf16>
    %c0_5 = arith.constant 0 : index
    %c0_6 = arith.constant 0 : index
    %c0_7 = arith.constant 0 : index
    %14 = vector.load %arg4[%c0_5, %c0_6, %c0_7] : memref<1x256x128xbf16, #tpu.memory_space<vmem>>, vector<1x256x128xbf16>
    %15 = vector.shape_cast %14 : vector<1x256x128xbf16> to vector<256x128xbf16>
    %cst_8 = arith.constant dense<0.000000e+00> : vector<128x128xf32>
    %16 = tpu.matmul %13, %15, %cst_8 {dimension_numbers = #tpu.dot_dimension_numbers<[1], [0], [0], [1], [0, 0, 1, 1], [], []>} : vector<128x256xbf16>, vector<256x128xbf16>, vector<128x128xf32> -> vector<128x128xf32>
    %c0_i32 = arith.constant 0 : i32
    %17 = arith.cmpi eq, %arg1, %c0_i32 : i32
    %18 = arith.extui %17 : i1 to i32
    %c0_i32_9 = arith.constant 0 : i32
    %19 = arith.cmpi ne, %18, %c0_i32_9 : i32
    scf.if %19 {
      %c0_13 = arith.constant 0 : index
      %c0_14 = arith.constant 0 : index
      %26 = vector.load %arg6[%c0_13, %c0_14] : memref<128x128xf32, #tpu.memory_space<vmem>>, vector<128x128xf32>
      tpu.vector_store %arg6[%c0_13, %c0_14], %16 {strides = array<i32>} : memref<128x128xf32, #tpu.memory_space<vmem>>, vector<128x128xf32>,
    } else {
    }
    %c0_i32_10 = arith.constant 0 : i32
    %20 = arith.cmpi sgt, %arg1, %c0_i32_10 : i32
    %21 = arith.extui %20 : i1 to i32
    %c0_i32_11 = arith.constant 0 : i32
    %22 = arith.cmpi ne, %21, %c0_i32_11 : i32
    scf.if %22 {
      %c0_13 = arith.constant 0 : index
      %c0_14 = arith.constant 0 : index
      %26 = vector.load %arg6[%c0_13, %c0_14] : memref<128x128xf32, #tpu.memory_space<vmem>>, vector<128x128xf32>
      %27 = arith.addf %26, %16 : vector<128x128xf32>
      %c0_15 = arith.constant 0 : index
      %c0_16 = arith.constant 0 : index
      %28 = vector.load %arg6[%c0_15, %c0_16] : memref<128x128xf32, #tpu.memory_space<vmem>>, vector<128x128xf32>
      tpu.vector_store %arg6[%c0_15, %c0_16], %27 {strides = array<i32>} : memref<128x128xf32, #tpu.memory_space<vmem>>, vector<128x128xf32>,
    } else {
    }
    %c1_i32 = arith.constant 1 : i32
    %23 = arith.cmpi eq, %arg1, %c1_i32 : i32
    %24 = arith.extui %23 : i1 to i32
    %c0_i32_12 = arith.constant 0 : i32
    %25 = arith.cmpi ne, %24, %c0_i32_12 : i32
    scf.if %25 {
      %c0_13 = arith.constant 0 : index
      %c0_14 = arith.constant 0 : index
      %26 = vector.load %arg6[%c0_13, %c0_14] : memref<128x128xf32, #tpu.memory_space<vmem>>, vector<128x128xf32>
      %c0_15 = arith.constant 0 : index
      %c0_16 = arith.constant 0 : index
      %27 = vector.load %arg5[%c0_15, %c0_16] : memref<128x128xf32, #tpu.memory_space<vmem>>, vector<128x128xf32>
      tpu.vector_store %arg5[%c0_15, %c0_16], %26 {strides = array<i32>} : memref<128x128xf32, #tpu.memory_space<vmem>>, vector<128x128xf32>,
    } else {
    }
    return
  }
  func.func @transform_0(%arg0: i32, %arg1: i32) -> (i32, i32) {
    %c0_i32 = arith.constant 0 : i32
    %c0_i32_0 = arith.constant 0 : i32
    return %arg0, %c0_i32 : i32, i32
  }
  func.func @transform_1(%arg0: i32, %arg1: i32) -> (i32, i32, i32) {
    %c0_i32 = arith.constant 0 : i32
    %c0_i32_0 = arith.constant 0 : i32
    %c0_i32_1 = arith.constant 0 : i32
    return %arg1, %c0_i32, %c0_i32_0 : i32, i32, i32
  }
  func.func @transform_2(%arg0: i32, %arg1: i32) -> (i32, i32, i32) {
    %c0_i32 = arith.constant 0 : i32
    %c0_i32_0 = arith.constant 0 : i32
    %c0_i32_1 = arith.constant 0 : i32
    return %arg1, %c0_i32, %c0_i32_0 : i32, i32, i32
  }
  func.func @transform_3(%arg0: i32, %arg1: i32) -> (i32, i32) {
    %c0_i32 = arith.constant 0 : i32
    %c0_i32_0 = arith.constant 0 : i32
    return %arg0, %c0_i32 : i32, i32
  }
}

</mosaic_0001>

<llo_original>
// kernel: tpu_custom_call.1
$region0: #{tpu_custom_call.1}
  #allocation0 [shape = 'u32[]', space=smem, size = 0x4, offset = 0x4, fixed_abs, tag = 'smem constant byte address 0x4 - core index']
  #allocation1 [shape = 'u32[144,128]{1,0:T(1,128)}', space=vmem, size = 0x12000, scoped, tag = 'internal scratch']
  #allocation2 [shape = 'f32[128,128]{1,0:T(8,128)}', space=vmem, size = 0x10000, scoped, tag = 'scratch operand']
  %s0 = inlined_call_operand.hbm [shape: bf16[128,128], index: 0, kind: input, shape index: {}]
  %s1 = inlined_call_operand.hbm [shape: bf16[2,128,512], index: 1, kind: input, shape index: {}]
  %s2 = inlined_call_operand.hbm [shape: bf16[2,256,128], index: 2, kind: input, shape index: {}]
  %s3 = inlined_call_operand.hbm [shape: f32[128,128], index: 3, kind: output, shape index: {}]
  %s4 = sld [smem:[#allocation0]]
  $region69: #{tpu_custom_call.1} parent=0
    _
  %s6 = ssub.s32 1, %s4
  %s7 = scalar_select 0, %s6, %s4
  $region1: #{tpu_custom_call.1} parent=0
    #allocation3 [shape = 'u8[32768]{0}', space=vmem, size = 0x8000, scoped, tag = 'input window, operand 0, single buffered']
    #allocation4 [shape = 's32[2]{0}', space=sflag, size = 0x8, scoped, tag = 'scoped memory for tpu_custom_call.1']
    #allocation5 [shape = 's32[2]{0}', space=sflag, size = 0x8, scoped, tag = 'scoped memory for tpu_custom_call.1']
    #allocation6 [shape = 'u8[262144]{0}', space=vmem, size = 0x40000, scoped, tag = 'input window, operand 1']
    #allocation7 [shape = 's32[2]{0}', space=sflag, size = 0x8, scoped, tag = 'scoped memory for tpu_custom_call.1']
    #allocation8 [shape = 'u8[131072]{0}', space=vmem, size = 0x20000, scoped, tag = 'input window, operand 2']
    #allocation9 [shape = 'u8[65536]{0}', space=vmem, size = 0x10000, scoped, tag = 'output window, operand 0, single buffered']
    %8 = vsyncpa [#allocation4], 0
    %9 = vsyncpa [#allocation7], 0
    %s10 = scalar_lea.sflag [#allocation7], 1
    %11 = vsyncpa %s10, 0
    %12 = vsyncpa [#allocation5], 0
    loop: start=0, step=1, limit=4
    $region2: #{tpu_custom_call.1} parent=1 // loop_pre_header
      _
    $region3: #{tpu_custom_call.1} parent=1 // loop_header
      %s14 = sphi 0, %s18
      %p15 = scmp.ge.s32.totalorder %s14, 4
      %s21 = sphi 0, %s33
      %s22 = sphi 0, %s29
      %s23 = sphi 0, %s21
      %s24 = sphi 0, %s22
      %s25 = sphi 0, %s23
      %s26 = sphi 0, %s24
      %s36 = sphi 0, %s38
      %s39 = sphi 0, %s36
      %s40 = sphi 0, %s39
      %s56 = sphi 0, %s40
      %s62 = sphi 0, %s64
      %s65 = sphi 0, %s62
      %s66 = sphi 0, %s65
      %s82 = sphi 0, %s66
      %s88 = sphi 0, %s90
      %s91 = sphi 0, %s88
      %s92 = sphi 0, %s91
      %s108 = sphi 0, %s92
      %s114 = sphi 0, %s116
      %s117 = sphi 0, %s114
      %s118 = sphi 0, %s117
      %s134 = sphi 0, %s118
    $region4: #{tpu_custom_call.1} parent=1 // loop_header_branch
      %17 = sbr.rel (%p15) target = $region8
    $region5: #{tpu_custom_call.1} parent=1 // loop_body
      %s19 = ssub.s32 %s14, 1
      %s20 = ssub.s32 %s14, 2
      %s27 = sadd.s32 1, %s22
      %p28 = scmp.ge.s32.totalorder %s27, 2
      %s29 = scalar_select %p28, 0, %s27
      %s30 = sadd.s32 1, %s21
      %s31 = scalar_select %p28, %s30, %s21
      %p32 = scmp.ge.s32.totalorder %s31, 1
      %s33 = scalar_select %p32, 0, %s31
      %s34 = ssub.s32 %s21, %s33
      %p35 = scmp.eq.s32.totalorder %s34, 0
      %s37 = sadd.s32 %s36, 1
      %s38 = scalar_select %p35, %s36, %s37
      %p41 = pneg %p35
      %p42 = scmp.eq.s32.totalorder %s14, 1
      %p43 = por %p41, %p42
      %p44 = scmp.ne.s32.totalorder %s36, %s39
      %p45 = scmp.eq.s32.totalorder %s14, 0
      %p46 = por %p44, %p45
      %p47 = scmp.ne.s32.totalorder %s36, %s39
      %p48 = scmp.eq.s32.totalorder %s19, 1
      %p49 = por %p47, %p48
      %p50 = scmp.ne.s32.totalorder %s39, %s40
      %p51 = scmp.eq.s32.totalorder %s19, 0
      %p52 = por %p50, %p51
      %p53 = scmp.ne.s32.totalorder %s39, %s40
      %p54 = scmp.eq.s32.totalorder %s20, 1
      %p55 = por %p53, %p54
      %p57 = scmp.ne.s32.totalorder %s40, %s56
      %p58 = scmp.eq.s32.totalorder %s20, 0
      %p59 = por %p57, %p58
      %s60 = ssub.s32 %s22, %s29
      %p61 = scmp.eq.s32.totalorder %s60, 0
      %s63 = sadd.s32 %s62, 1
      %s64 = scalar_select %p61, %s62, %s63
      %p67 = pneg %p61
      %p68 = scmp.eq.s32.totalorder %s14, 1
      %p69 = por %p67, %p68
      %p70 = scmp.ne.s32.totalorder %s62, %s65
      %p71 = scmp.eq.s32.totalorder %s14, 0
      %p72 = por %p70, %p71
      %p73 = scmp.ne.s32.totalorder %s62, %s65
      %p74 = scmp.eq.s32.totalorder %s19, 1
      %p75 = por %p73, %p74
      %p76 = scmp.ne.s32.totalorder %s65, %s66
      %p77 = scmp.eq.s32.totalorder %s19, 0
      %p78 = por %p76, %p77
      %p79 = scmp.ne.s32.totalorder %s65, %s66
      %p80 = scmp.eq.s32.totalorder %s20, 1
      %p81 = por %p79, %p80
      %p83 = scmp.ne.s32.totalorder %s66, %s82
      %p84 = scmp.eq.s32.totalorder %s20, 0
      %p85 = por %p83, %p84
      %s86 = ssub.s32 %s22, %s29
      %p87 = scmp.eq.s32.totalorder %s86, 0
      %s89 = sadd.s32 %s88, 1
      %s90 = scalar_select %p87, %s88, %s89
      %p93 = pneg %p87
      %p94 = scmp.eq.s32.totalorder %s14, 1
      %p95 = por %p93, %p94
      %p96 = scmp.ne.s32.totalorder %s88, %s91
      %p97 = scmp.eq.s32.totalorder %s14, 0
      %p98 = por %p96, %p97
      %p99 = scmp.ne.s32.totalorder %s88, %s91
      %p100 = scmp.eq.s32.totalorder %s19, 1
      %p101 = por %p99, %p100
      %p102 = scmp.ne.s32.totalorder %s91, %s92
      %p103 = scmp.eq.s32.totalorder %s19, 0
      %p104 = por %p102, %p103
      %p105 = scmp.ne.s32.totalorder %s91, %s92
      %p106 = scmp.eq.s32.totalorder %s20, 1
      %p107 = por %p105, %p106
      %p109 = scmp.ne.s32.totalorder %s92, %s108
      %p110 = scmp.eq.s32.totalorder %s20, 0
      %p111 = por %p109, %p110
      %s112 = ssub.s32 %s21, %s33
      %p113 = scmp.eq.s32.totalorder %s112, 0
      %s115 = sadd.s32 %s114, 1
      %s116 = scalar_select %p113, %s114, %s115
      %p119 = pneg %p113
      %p120 = scmp.eq.s32.totalorder %s14, 1
      %p121 = por %p119, %p120
      %p122 = scmp.ne.s32.totalorder %s114, %s117
      %p123 = scmp.eq.s32.totalorder %s14, 0
      %p124 = por %p122, %p123
      %p125 = scmp.ne.s32.totalorder %s114, %s117
      %p126 = scmp.eq.s32.totalorder %s19, 1
      %p127 = por %p125, %p126
      %p128 = scmp.ne.s32.totalorder %s117, %s118
      %p129 = scmp.eq.s32.totalorder %s19, 0
      %p130 = por %p128, %p129
      %p131 = scmp.ne.s32.totalorder %s117, %s118
      %p132 = scmp.eq.s32.totalorder %s20, 1
      %p133 = por %p131, %p132
      %p135 = scmp.ne.s32.totalorder %s118, %s134
      %p136 = scmp.eq.s32.totalorder %s20, 0
      %p137 = por %p135, %p136
      %p138 = scmp.le.s32.totalorder 1, %s14
      %p139 = scmp.lt.s32.totalorder %s14, 3
      %p140 = pnand %p138, %p139
      %p141 = pneg %p140
      // Predicated region
      $region9: #{tpu_custom_call.1} parent=5 // pred_check
        _
      $region10: #{tpu_custom_call.1} parent=5 // pred_check_branch
        %143 = sbr.rel (%p140) target = $region12
      $region11: #{tpu_custom_call.1} parent=5 // pred_region
        %s144 = ssub.s32 %s14, 1
        // Predicated region
        $region13: #{tpu_custom_call.1} parent=11 // pred_check
          %p145 = pneg %p52
        $region14: #{tpu_custom_call.1} parent=11 // pred_check_branch
          %147 = sbr.rel (%p145) target = $region16
        $region15: #{tpu_custom_call.1} parent=11 // pred_region
          %s148 = smul.u32 16, %s23
          %s150 = ssub.s32 1024, 1024
          %151 = vsyncadd [#allocation4], %s150
          %s152 = smul.addr %s148, 64
          %s153 = scalar_lea.hbm %s0, %s152
          %s154 = sshll.u32 [#allocation3], 4
          %s155 = int_to_ptr.vmem [resolvable:$true] %s154
          %160 = dma.hbm_to_vmem [thread:$0]  %s153, 1024, %s155, [#allocation4], 64, 64, 4
        $region16: #{tpu_custom_call.1} parent=11 // pred_fallthru
          _
      $region12: #{tpu_custom_call.1} parent=5 // pred_fallthru
        _
      %p161 = scmp.lt.s32.totalorder %s14, 2
      // Predicated region
      $region17: #{tpu_custom_call.1} parent=5 // pred_check
        %p162 = pneg %p161
      $region18: #{tpu_custom_call.1} parent=5 // pred_check_branch
        %164 = sbr.rel (%p162) target = $region20
      $region19: #{tpu_custom_call.1} parent=5 // pred_region
        // Predicated region
        $region21: #{tpu_custom_call.1} parent=19 // pred_check
          %p165 = pneg %p72
        $region22: #{tpu_custom_call.1} parent=19 // pred_check_branch
          %167 = sbr.rel (%p165) target = $region24
        $region23: #{tpu_custom_call.1} parent=19 // pred_region
          %s168 = sand.u32 %s14, 1
          %s169 = scalar_lea.sflag [#allocation7], %s168
          %s170 = sand.u32 %s62, 1
          %s171 = smul.addr %s170, 256
          %s172 = scalar_lea.vmem [#allocation6], %s171
          %s174 = ssub.s32 4096, 4096
          %175 = vsyncadd %s169, %s174
          %s176 = smul.addr %s22, 64
          %s177 = smul.addr %s176, 64
          %s178 = scalar_lea.hbm %s1, %s177
          %s179 = sshll.u32 %s172, 4
          %s180 = int_to_ptr.vmem [resolvable:$true] %s179
          %185 = dma.hbm_to_vmem [thread:$0]  %s178, 4096, %s180, %s169, 256, 256, 16
        $region24: #{tpu_custom_call.1} parent=19 // pred_fallthru
          _
        // Predicated region
        $region25: #{tpu_custom_call.1} parent=19 // pred_check
          %p186 = pneg %p98
        $region26: #{tpu_custom_call.1} parent=19 // pred_check_branch
          %188 = sbr.rel (%p186) target = $region28
        $region27: #{tpu_custom_call.1} parent=19 // pred_region
          %s189 = sand.u32 %s14, 1
          %s190 = scalar_lea.sflag [#allocation7], %s189
          %s191 = sand.u32 %s88, 1
          %s192 = smul.addr %s191, 128
          %s193 = scalar_lea.vmem [#allocation8], %s192
          %s195 = ssub.s32 2048, 2048
          %196 = vsyncadd %s190, %s195
          %s197 = smul.addr %s22, 32
          %s198 = smul.addr %s197, 64
          %s199 = scalar_lea.hbm %s2, %s198
          %s200 = sshll.u32 %s193, 4
          %s201 = int_to_ptr.vmem [resolvable:$true] %s200
          %206 = dma.hbm_to_vmem [thread:$0]  %s199, 2048, %s201, %s190, 64, 64, 4
        $region28: #{tpu_custom_call.1} parent=19 // pred_fallthru
          _
      $region20: #{tpu_custom_call.1} parent=5 // pred_fallthru
        _
      %p207 = scmp.le.s32.totalorder 1, %s14
      %p208 = scmp.lt.s32.totalorder %s14, 3
      %p209 = pnand %p207, %p208
      %p210 = pneg %p209
      // Predicated region
      $region29: #{tpu_custom_call.1} parent=5 // pred_check
        _
      $region30: #{tpu_custom_call.1} parent=5 // pred_check_branch
        %212 = sbr.rel (%p209) target = $region32
      $region31: #{tpu_custom_call.1} parent=5 // pred_region
        %s213 = ssub.s32 %s14, 1
        // Predicated region
        $region33: #{tpu_custom_call.1} parent=31 // pred_check
          %p214 = pneg %p52
        $region34: #{tpu_custom_call.1} parent=31 // pred_check_branch
          %216 = sbr.rel (%p214) target = $region36
        $region35: #{tpu_custom_call.1} parent=31 // pred_region
          %217 = dma.done [#allocation4], 1024
        $region36: #{tpu_custom_call.1} parent=31 // pred_fallthru
          _
        %s218 = sand.u32 %s19, 1
        %s219 = scalar_lea.sflag [#allocation7], %s218
        %s220 = sand.u32 %s65, 1
        %s221 = smul.addr %s220, 256
        %s222 = scalar_lea.vmem [#allocation6], %s221
        // Predicated region
        $region37: #{tpu_custom_call.1} parent=31 // pred_check
          %p223 = pneg %p78
        $region38: #{tpu_custom_call.1} parent=31 // pred_check_branch
          %225 = sbr.rel (%p223) target = $region40
        $region39: #{tpu_custom_call.1} parent=31 // pred_region
          %226 = dma.done %s219, 4096
        $region40: #{tpu_custom_call.1} parent=31 // pred_fallthru
          _
        %s227 = sand.u32 %s19, 1
        %s228 = scalar_lea.sflag [#allocation7], %s227
        %s229 = sand.u32 %s91, 1
        %s230 = smul.addr %s229, 128
        %s231 = scalar_lea.vmem [#allocation8], %s230
        // Predicated region
        $region41: #{tpu_custom_call.1} parent=31 // pred_check
          %p232 = pneg %p104
        $region42: #{tpu_custom_call.1} parent=31 // pred_check_branch
          %234 = sbr.rel (%p232) target = $region44
        $region43: #{tpu_custom_call.1} parent=31 // pred_region
          %235 = dma.done %s228, 2048
        $region44: #{tpu_custom_call.1} parent=31 // pred_fallthru
          _
        %p236 = pneg %p52
        %p237 = pneg %p49
        %s238 = sand.u32 %s19, 1
        %s239 = scalar_lea.sflag [#allocation7], %s238
        %s240 = sand.u32 %s65, 1
        %s241 = smul.addr %s240, 256
        %s242 = scalar_lea.vmem [#allocation6], %s241
        %p243 = pneg %p78
        %p244 = pneg %p75
        %s245 = sand.u32 %s19, 1
        %s246 = scalar_lea.sflag [#allocation7], %s245
        %s247 = sand.u32 %s91, 1
        %s248 = smul.addr %s247, 128
        %s249 = scalar_lea.vmem [#allocation8], %s248
        %p250 = pneg %p104
        %p251 = pneg %p101
        %p252 = pneg %p130
        %p253 = pneg %p127
        %s254 = smul.u32 16, %s23
        %s255 = smul.u32 16, %s23
        %v257 = vld [vmem:[#allocation3] sm:$0xf]
        %v258 = vld [vmem:[#allocation3 + $0x4] sm:$0xf]
        %v259 = vld [vmem:[#allocation3 + $0x8] sm:$0xf]
        %v260 = vld [vmem:[#allocation3 + $0xc] sm:$0xf]
        %v261 = vld [vmem:[#allocation3 + $0x10] sm:$0xf]
        %v262 = vld [vmem:[#allocation3 + $0x14] sm:$0xf]
        %v263 = vld [vmem:[#allocation3 + $0x18] sm:$0xf]
        %v264 = vld [vmem:[#allocation3 + $0x1c] sm:$0xf]
        %v265 = vld [vmem:[#allocation3 + $0x20] sm:$0xf]
        %v266 = vld [vmem:[#allocation3 + $0x24] sm:$0xf]
        %v267 = vld [vmem:[#allocation3 + $0x28] sm:$0xf]
        %v268 = vld [vmem:[#allocation3 + $0x2c] sm:$0xf]
        %v269 = vld [vmem:[#allocation3 + $0x30] sm:$0xf]
        %v270 = vld [vmem:[#allocation3 + $0x34] sm:$0xf]
        %v271 = vld [vmem:[#allocation3 + $0x38] sm:$0xf]
        %v272 = vld [vmem:[#allocation3 + $0x3c] sm:$0xf]
        %v273 = vld [vmem:[%s222] sm:$0xff]
        %v274 = vld [vmem:[%s222 + $0x8] sm:$0xff]
        %v275 = vld [vmem:[%s222 + $0x10] sm:$0xff]
        %v276 = vld [vmem:[%s222 + $0x18] sm:$0xff]
        %v277 = vld [vmem:[%s222 + $0x20] sm:$0xff]
        %v278 = vld [vmem:[%s222 + $0x28] sm:$0xff]
        %v279 = vld [vmem:[%s222 + $0x30] sm:$0xff]
        %v280 = vld [vmem:[%s222 + $0x38] sm:$0xff]
        %v281 = vld [vmem:[%s222 + $0x40] sm:$0xff]
        %v282 = vld [vmem:[%s222 + $0x48] sm:$0xff]
        %v283 = vld [vmem:[%s222 + $0x50] sm:$0xff]
        %v284 = vld [vmem:[%s222 + $0x58] sm:$0xff]
        %v285 = vld [vmem:[%s222 + $0x60] sm:$0xff]
        %v286 = vld [vmem:[%s222 + $0x68] sm:$0xff]
        %v287 = vld [vmem:[%s222 + $0x70] sm:$0xff]
        %v288 = vld [vmem:[%s222 + $0x78] sm:$0xff]
        %v289 = vld [vmem:[%s222 + $0x80] sm:$0xff]
        %v290 = vld [vmem:[%s222 + $0x88] sm:$0xff]
        %v291 = vld [vmem:[%s222 + $0x90] sm:$0xff]
        %v292 = vld [vmem:[%s222 + $0x98] sm:$0xff]
        %v293 = vld [vmem:[%s222 + $0xa0] sm:$0xff]
        %v294 = vld [vmem:[%s222 + $0xa8] sm:$0xff]
        %v295 = vld [vmem:[%s222 + $0xb0] sm:$0xff]
        %v296 = vld [vmem:[%s222 + $0xb8] sm:$0xff]
        %v297 = vld [vmem:[%s222 + $0xc0] sm:$0xff]
        %v298 = vld [vmem:[%s222 + $0xc8] sm:$0xff]
        %v299 = vld [vmem:[%s222 + $0xd0] sm:$0xff]
        %v300 = vld [vmem:[%s222 + $0xd8] sm:$0xff]
        %v301 = vld [vmem:[%s222 + $0xe0] sm:$0xff]
        %v302 = vld [vmem:[%s222 + $0xe8] sm:$0xff]
        %v303 = vld [vmem:[%s222 + $0xf0] sm:$0xff]
        %v304 = vld [vmem:[%s222 + $0xf8] sm:$0xff]
        %v321 = vunpack.c.l.b16 %v257
        %v322 = vunpack.c.l.b16 %v258
        %v323 = vunpack.c.l.b16 %v259
        %v324 = vunpack.c.l.b16 %v260
        %v325 = vunpack.c.l.b16 %v261
        %v326 = vunpack.c.l.b16 %v262
        %v327 = vunpack.c.l.b16 %v263
        %v328 = vunpack.c.l.b16 %v264
        %v329 = vunpack.c.l.b16 %v265
        %v330 = vunpack.c.l.b16 %v266
        %v331 = vunpack.c.l.b16 %v267
        %v332 = vunpack.c.l.b16 %v268
        %v333 = vunpack.c.l.b16 %v269
        %v334 = vunpack.c.l.b16 %v270
        %v335 = vunpack.c.l.b16 %v271
        %v336 = vunpack.c.l.b16 %v272
        %v337 = vpack.c.b16 %v322, %v321
        %v338 = vpack.c.b16 %v324, %v323
        %v339 = vpack.c.b16 %v326, %v325
        %v340 = vpack.c.b16 %v328, %v327
        %v341 = vpack.c.b16 %v330, %v329
        %v342 = vpack.c.b16 %v332, %v331
        %v343 = vpack.c.b16 %v334, %v333
        %v344 = vpack.c.b16 %v336, %v335
        %v385 = vunpack.c.l.b16 %v273
        %v386 = vunpack.c.h.b16 %v273
        %v387 = vunpack.c.l.b16 %v274
        %v388 = vunpack.c.h.b16 %v274
        %v389 = vunpack.c.l.b16 %v275
        %v390 = vunpack.c.h.b16 %v275
        %v391 = vunpack.c.l.b16 %v276
        %v392 = vunpack.c.h.b16 %v276
        %v393 = vunpack.c.l.b16 %v277
        %v394 = vunpack.c.h.b16 %v277
        %v395 = vunpack.c.l.b16 %v278
        %v396 = vunpack.c.h.b16 %v278
        %v397 = vunpack.c.l.b16 %v279
        %v398 = vunpack.c.h.b16 %v279
        %v399 = vunpack.c.l.b16 %v280
        %v400 = vunpack.c.h.b16 %v280
        %v401 = vunpack.c.l.b16 %v281
        %v402 = vunpack.c.h.b16 %v281
        %v403 = vunpack.c.l.b16 %v282
        %v404 = vunpack.c.h.b16 %v282
        %v405 = vunpack.c.l.b16 %v283
        %v406 = vunpack.c.h.b16 %v283
        %v407 = vunpack.c.l.b16 %v284
        %v408 = vunpack.c.h.b16 %v284
        %v409 = vunpack.c.l.b16 %v285
        %v410 = vunpack.c.h.b16 %v285
        %v411 = vunpack.c.l.b16 %v286
        %v412 = vunpack.c.h.b16 %v286
        %v413 = vunpack.c.l.b16 %v287
        %v414 = vunpack.c.h.b16 %v287
        %v415 = vunpack.c.l.b16 %v288
        %v416 = vunpack.c.h.b16 %v288
        %v417 = vunpack.c.l.b16 %v289
        %v418 = vunpack.c.h.b16 %v289
        %v419 = vunpack.c.l.b16 %v290
        %v420 = vunpack.c.h.b16 %v290
        %v421 = vunpack.c.l.b16 %v291
        %v422 = vunpack.c.h.b16 %v291
        %v423 = vunpack.c.l.b16 %v292
        %v424 = vunpack.c.h.b16 %v292
        %v425 = vunpack.c.l.b16 %v293
        %v426 = vunpack.c.h.b16 %v293
        %v427 = vunpack.c.l.b16 %v294
        %v428 = vunpack.c.h.b16 %v294
        %v429 = vunpack.c.l.b16 %v295
        %v430 = vunpack.c.h.b16 %v295
        %v431 = vunpack.c.l.b16 %v296
        %v432 = vunpack.c.h.b16 %v296
        %v433 = vunpack.c.l.b16 %v297
        %v434 = vunpack.c.h.b16 %v297
        %v435 = vunpack.c.l.b16 %v298
        %v436 = vunpack.c.h.b16 %v298
        %v437 = vunpack.c.l.b16 %v299
        %v438 = vunpack.c.h.b16 %v299
        %v439 = vunpack.c.l.b16 %v300
        %v440 = vunpack.c.h.b16 %v300
        %v441 = vunpack.c.l.b16 %v301
        %v442 = vunpack.c.h.b16 %v301
        %v443 = vunpack.c.l.b16 %v302
        %v444 = vunpack.c.h.b16 %v302
        %v445 = vunpack.c.l.b16 %v303
        %v446 = vunpack.c.h.b16 %v303
        %v447 = vunpack.c.l.b16 %v304
        %v448 = vunpack.c.h.b16 %v304
        %v449 = vpack.c.b16 %v389, %v385
        %v450 = vpack.c.b16 %v390, %v386
        %v451 = vpack.c.b16 %v391, %v387
        %v452 = vpack.c.b16 %v392, %v388
        %v453 = vpack.c.b16 %v397, %v393
        %v454 = vpack.c.b16 %v398, %v394
        %v455 = vpack.c.b16 %v399, %v395
        %v456 = vpack.c.b16 %v400, %v396
        %v457 = vpack.c.b16 %v405, %v401
        %v458 = vpack.c.b16 %v406, %v402
        %v459 = vpack.c.b16 %v407, %v403
        %v460 = vpack.c.b16 %v408, %v404
        %v461 = vpack.c.b16 %v413, %v409
        %v462 = vpack.c.b16 %v414, %v410
        %v463 = vpack.c.b16 %v415, %v411
        %v464 = vpack.c.b16 %v416, %v412
        %v465 = vpack.c.b16 %v421, %v417
        %v466 = vpack.c.b16 %v422, %v418
        %v467 = vpack.c.b16 %v423, %v419
        %v468 = vpack.c.b16 %v424, %v420
        %v469 = vpack.c.b16 %v429, %v425
        %v470 = vpack.c.b16 %v430, %v426
        %v471 = vpack.c.b16 %v431, %v427
        %v472 = vpack.c.b16 %v432, %v428
        %v473 = vpack.c.b16 %v437, %v433
        %v474 = vpack.c.b16 %v438, %v434
        %v475 = vpack.c.b16 %v439, %v435
        %v476 = vpack.c.b16 %v440, %v436
        %v477 = vpack.c.b16 %v445, %v441
        %v478 = vpack.c.b16 %v446, %v442
        %v479 = vpack.c.b16 %v447, %v443
        %v480 = vpack.c.b16 %v448, %v444
        %513 = vmatprep.subr.bf16.mxu0 %v450
        %514 = vmatpush1.bf16.msra.mxu0 %v449
        %515 = vmatprep.subr.bf16.mxu0 %v454
        %516 = vmatpush1.bf16.msra.mxu0 %v453
        %517 = vmatprep.subr.bf16.mxu0 %v458
        %518 = vmatpush1.bf16.msra.mxu0 %v457
        %519 = vmatprep.subr.bf16.mxu0 %v462
        %520 = vmatpush1.bf16.msra.mxu0 %v461
        %521 = vmatprep.subr.bf16.mxu0 %v466
        %522 = vmatpush1.bf16.msra.mxu0 %v465
        %523 = vmatprep.subr.bf16.mxu0 %v470
        %524 = vmatpush1.bf16.msra.mxu0 %v469
        %525 = vmatprep.subr.bf16.mxu0 %v474
        %526 = vmatpush1.bf16.msra.mxu0 %v473
        %527 = vmatprep.subr.bf16.mxu0 %v478
        %528 = vmatpush1.bf16.msra.mxu0 %v477
        %529 = vmatprep.subr.bf16.mxu0 0
        %530 = vmatpush1.bf16.msra.mxu0 0
        %531 = vmatprep.subr.bf16.mxu0 0
        %532 = vmatpush1.bf16.msra.mxu0 0
        %533 = vmatprep.subr.bf16.mxu0 0
        %534 = vmatpush1.bf16.msra.mxu0 0
        %535 = vmatprep.subr.bf16.mxu0 0
        %536 = vmatpush1.bf16.msra.mxu0 0
        %537 = vmatprep.subr.bf16.mxu0 0
        %538 = vmatpush1.bf16.msra.mxu0 0
        %539 = vmatprep.subr.bf16.mxu0 0
        %540 = vmatpush1.bf16.msra.mxu0 0
        %541 = vmatprep.subr.bf16.mxu0 0
        %542 = vmatpush1.bf16.msra.mxu0 0
        %543 = vmatprep.subr.bf16.mxu0 0
        %544 = vmatpush1.bf16.msra.mxu0 0
        %545 = vmatprep.mubr.bf16.mxu0 0
        %546 = vmatmul.mubr.bf16.gmra.mrb[0].mxu0 %v337
        %v547 = vpop.f32.mrb[0].mxu0
        %v548 = vadd.f32 0.0, %v547
        %v549 = vpop.f32.mrb[0].mxu0
        %v550 = vadd.f32 0.0, %v549
        %v551 = vpop.f32.mrb[0].mxu0
        %v552 = vadd.f32 0.0, %v551
        %v553 = vpop.f32.mrb[0].mxu0
        %v554 = vadd.f32 0.0, %v553
        %555 = vmatprep.mubr.bf16.mxu0 0
        %556 = vmatmul.mubr.bf16.gmra.mrb[0].mxu0 %v338
        %v557 = vpop.f32.mrb[0].mxu0
        %v558 = vadd.f32 0.0, %v557
        %v559 = vpop.f32.mrb[0].mxu0
        %v560 = vadd.f32 0.0, %v559
        %v561 = vpop.f32.mrb[0].mxu0
        %v562 = vadd.f32 0.0, %v561
        %v563 = vpop.f32.mrb[0].mxu0
        %v564 = vadd.f32 0.0, %v563
        %565 = vmatprep.mubr.bf16.mxu0 0
        %566 = vmatmul.mubr.bf16.gmra.mrb[0].mxu0 %v339
        %v567 = vpop.f32.mrb[0].mxu0
        %v568 = vadd.f32 0.0, %v567
        %v569 = vpop.f32.mrb[0].mxu0
        %v570 = vadd.f32 0.0, %v569
        %v571 = vpop.f32.mrb[0].mxu0
        %v572 = vadd.f32 0.0, %v571
        %v573 = vpop.f32.mrb[0].mxu0
        %v574 = vadd.f32 0.0, %v573
        %575 = vmatprep.mubr.bf16.mxu0 0
        %576 = vmatmul.mubr.bf16.gmra.mrb[0].mxu0 %v340
        %v577 = vpop.f32.mrb[0].mxu0
        %v578 = vadd.f32 0.0, %v577
        %v579 = vpop.f32.mrb[0].mxu0
        %v580 = vadd.f32 0.0, %v579
        %v581 = vpop.f32.mrb[0].mxu0
        %v582 = vadd.f32 0.0, %v581
        %v583 = vpop.f32.mrb[0].mxu0
        %v584 = vadd.f32 0.0, %v583
        %585 = vmatprep.mubr.bf16.mxu0 0
        %586 = vmatmul.mubr.bf16.gmra.mrb[0].mxu0 %v341
        %v587 = vpop.f32.mrb[0].mxu0
        %v588 = vadd.f32 0.0, %v587
        %v589 = vpop.f32.mrb[0].mxu0
        %v590 = vadd.f32 0.0, %v589
        %v591 = vpop.f32.mrb[0].mxu0
        %v592 = vadd.f32 0.0, %v591
        %v593 = vpop.f32.mrb[0].mxu0
        %v594 = vadd.f32 0.0, %v593
        %595 = vmatprep.mubr.bf16.mxu0 0
        %596 = vmatmul.mubr.bf16.gmra.mrb[0].mxu0 %v342
        %v597 = vpop.f32.mrb[0].mxu0
        %v598 = vadd.f32 0.0, %v597
        %v599 = vpop.f32.mrb[0].mxu0
        %v600 = vadd.f32 0.0, %v599
        %v601 = vpop.f32.mrb[0].mxu0
        %v602 = vadd.f32 0.0, %v601
        %v603 = vpop.f32.mrb[0].mxu0
        %v604 = vadd.f32 0.0, %v603
        %605 = vmatprep.mubr.bf16.mxu0 0
        %606 = vmatmul.mubr.bf16.gmra.mrb[0].mxu0 %v343
        %v607 = vpop.f32.mrb[0].mxu0
        %v608 = vadd.f32 0.0, %v607
        %v609 = vpop.f32.mrb[0].mxu0
        %v610 = vadd.f32 0.0, %v609
        %v611 = vpop.f32.mrb[0].mxu0
        %v612 = vadd.f32 0.0, %v611
        %v613 = vpop.f32.mrb[0].mxu0
        %v614 = vadd.f32 0.0, %v613
        %615 = vmatprep.mubr.bf16.mxu0 0
        %616 = vmatmul.mubr.bf16.gmra.mrb[0].mxu0 %v344
        %v617 = vpop.f32.mrb[0].mxu0
        %v618 = vadd.f32 0.0, %v617
        %v619 = vpop.f32.mrb[0].mxu0
        %v620 = vadd.f32 0.0, %v619
        %v621 = vpop.f32.mrb[0].mxu0
        %v622 = vadd.f32 0.0, %v621
        %v623 = vpop.f32.mrb[0].mxu0
        %v624 = vadd.f32 0.0, %v623
        %625 = vdwg.mxu0
        %626 = vmatprep.subr.bf16.mxu0 %v452
        %627 = vmatpush1.bf16.msra.mxu0 %v451
        %628 = vmatprep.subr.bf16.mxu0 %v456
        %629 = vmatpush1.bf16.msra.mxu0 %v455
        %630 = vmatprep.subr.bf16.mxu0 %v460
        %631 = vmatpush1.bf16.msra.mxu0 %v459
        %632 = vmatprep.subr.bf16.mxu0 %v464
        %633 = vmatpush1.bf16.msra.mxu0 %v463
        %634 = vmatprep.subr.bf16.mxu0 %v468
        %635 = vmatpush1.bf16.msra.mxu0 %v467
        %636 = vmatprep.subr.bf16.mxu0 %v472
        %637 = vmatpush1.bf16.msra.mxu0 %v471
        %638 = vmatprep.subr.bf16.mxu0 %v476
        %639 = vmatpush1.bf16.msra.mxu0 %v475
        %640 = vmatprep.subr.bf16.mxu0 %v480
        %641 = vmatpush1.bf16.msra.mxu0 %v479
        %642 = vmatprep.subr.bf16.mxu0 0
        %643 = vmatpush1.bf16.msra.mxu0 0
        %644 = vmatprep.subr.bf16.mxu0 0
        %645 = vmatpush1.bf16.msra.mxu0 0
        %646 = vmatprep.subr.bf16.mxu0 0
        %647 = vmatpush1.bf16.msra.mxu0 0
        %648 = vmatprep.subr.bf16.mxu0 0
        %649 = vmatpush1.bf16.msra.mxu0 0
        %650 = vmatprep.subr.bf16.mxu0 0
        %651 = vmatpush1.bf16.msra.mxu0 0
        %652 = vmatprep.subr.bf16.mxu0 0
        %653 = vmatpush1.bf16.msra.mxu0 0
        %654 = vmatprep.subr.bf16.mxu0 0
        %655 = vmatpush1.bf16.msra.mxu0 0
        %656 = vmatprep.subr.bf16.mxu0 0
        %657 = vmatpush1.bf16.msra.mxu0 0
        %658 = vmatprep.mubr.bf16.mxu0 0
        %659 = vmatmul.mubr.bf16.gmra.mrb[0].mxu0 %v337
        %v660 = vpop.f32.mrb[0].mxu0
        %v661 = vadd.f32 0.0, %v660
        %v662 = vpop.f32.mrb[0].mxu0
        %v663 = vadd.f32 0.0, %v662
        %v664 = vpop.f32.mrb[0].mxu0
        %v665 = vadd.f32 0.0, %v664
        %v666 = vpop.f32.mrb[0].mxu0
        %v667 = vadd.f32 0.0, %v666
        %668 = vmatprep.mubr.bf16.mxu0 0
        %669 = vmatmul.mubr.bf16.gmra.mrb[0].mxu0 %v338
        %v670 = vpop.f32.mrb[0].mxu0
        %v671 = vadd.f32 0.0, %v670
        %v672 = vpop.f32.mrb[0].mxu0
        %v673 = vadd.f32 0.0, %v672
        %v674 = vpop.f32.mrb[0].mxu0
        %v675 = vadd.f32 0.0, %v674
        %v676 = vpop.f32.mrb[0].mxu0
        %v677 = vadd.f32 0.0, %v676
        %678 = vmatprep.mubr.bf16.mxu0 0
        %679 = vmatmul.mubr.bf16.gmra.mrb[0].mxu0 %v339
        %v680 = vpop.f32.mrb[0].mxu0
        %v681 = vadd.f32 0.0, %v680
        %v682 = vpop.f32.mrb[0].mxu0
        %v683 = vadd.f32 0.0, %v682
        %v684 = vpop.f32.mrb[0].mxu0
        %v685 = vadd.f32 0.0, %v684
        %v686 = vpop.f32.mrb[0].mxu0
        %v687 = vadd.f32 0.0, %v686
        %688 = vmatprep.mubr.bf16.mxu0 0
        %689 = vmatmul.mubr.bf16.gmra.mrb[0].mxu0 %v340
        %v690 = vpop.f32.mrb[0].mxu0
        %v691 = vadd.f32 0.0, %v690
        %v692 = vpop.f32.mrb[0].mxu0
        %v693 = vadd.f32 0.0, %v692
        %v694 = vpop.f32.mrb[0].mxu0
        %v695 = vadd.f32 0.0, %v694
        %v696 = vpop.f32.mrb[0].mxu0
        %v697 = vadd.f32 0.0, %v696
        %698 = vmatprep.mubr.bf16.mxu0 0
        %699 = vmatmul.mubr.bf16.gmra.mrb[0].mxu0 %v341
        %v700 = vpop.f32.mrb[0].mxu0
        %v701 = vadd.f32 0.0, %v700
        %v702 = vpop.f32.mrb[0].mxu0
        %v703 = vadd.f32 0.0, %v702
        %v704 = vpop.f32.mrb[0].mxu0
        %v705 = vadd.f32 0.0, %v704
        %v706 = vpop.f32.mrb[0].mxu0
        %v707 = vadd.f32 0.0, %v706
        %708 = vmatprep.mubr.bf16.mxu0 0
        %709 = vmatmul.mubr.bf16.gmra.mrb[0].mxu0 %v342
        %v710 = vpop.f32.mrb[0].mxu0
        %v711 = vadd.f32 0.0, %v710
        %v712 = vpop.f32.mrb[0].mxu0
        %v713 = vadd.f32 0.0, %v712
        %v714 = vpop.f32.mrb[0].mxu0
        %v715 = vadd.f32 0.0, %v714
        %v716 = vpop.f32.mrb[0].mxu0
        %v717 = vadd.f32 0.0, %v716
        %718 = vmatprep.mubr.bf16.mxu0 0
        %719 = vmatmul.mubr.bf16.gmra.mrb[0].mxu0 %v343
        %v720 = vpop.f32.mrb[0].mxu0
        %v721 = vadd.f32 0.0, %v720
        %v722 = vpop.f32.mrb[0].mxu0
        %v723 = vadd.f32 0.0, %v722
        %v724 = vpop.f32.mrb[0].mxu0
        %v725 = vadd.f32 0.0, %v724
        %v726 = vpop.f32.mrb[0].mxu0
        %v727 = vadd.f32 0.0, %v726
        %728 = vmatprep.mubr.bf16.mxu0 0
        %729 = vmatmul.mubr.bf16.gmra.mrb[0].mxu0 %v344
        %v730 = vpop.f32.mrb[0].mxu0
        %v731 = vadd.f32 0.0, %v730
        %v732 = vpop.f32.mrb[0].mxu0
        %v733 = vadd.f32 0.0, %v732
        %v734 = vpop.f32.mrb[0].mxu0
        %v735 = vadd.f32 0.0, %v734
        %v736 = vpop.f32.mrb[0].mxu0
        %v737 = vadd.f32 0.0, %v736
        %738 = vdwg.mxu0
        %v739 = vxor.u32 %v548, 2147483648
        %v740 = vxor.u32 %v550, 2147483648
        %v741 = vxor.u32 %v552, 2147483648
        %v742 = vxor.u32 %v554, 2147483648
        %v743 = vxor.u32 %v558, 2147483648
        %v744 = vxor.u32 %v560, 2147483648
        %v745 = vxor.u32 %v562, 2147483648
        %v746 = vxor.u32 %v564, 2147483648
        %v747 = vxor.u32 %v568, 2147483648
        %v748 = vxor.u32 %v570, 2147483648
        %v749 = vxor.u32 %v572, 2147483648
        %v750 = vxor.u32 %v574, 2147483648
        %v751 = vxor.u32 %v578, 2147483648
        %v752 = vxor.u32 %v580, 2147483648
        %v753 = vxor.u32 %v582, 2147483648
        %v754 = vxor.u32 %v584, 2147483648
        %v755 = vxor.u32 %v588, 2147483648
        %v756 = vxor.u32 %v590, 2147483648
        %v757 = vxor.u32 %v592, 2147483648
        %v758 = vxor.u32 %v594, 2147483648
        %v759 = vxor.u32 %v598, 2147483648
        %v760 = vxor.u32 %v600, 2147483648
        %v761 = vxor.u32 %v602, 2147483648
        %v762 = vxor.u32 %v604, 2147483648
        %v763 = vxor.u32 %v608, 2147483648
        %v764 = vxor.u32 %v610, 2147483648
        %v765 = vxor.u32 %v612, 2147483648
        %v766 = vxor.u32 %v614, 2147483648
        %v767 = vxor.u32 %v618, 2147483648
        %v768 = vxor.u32 %v620, 2147483648
        %v769 = vxor.u32 %v622, 2147483648
        %v770 = vxor.u32 %v624, 2147483648
        %v771 = vmul.f32 %v739, 1.442695
        %v772 = vpow.pop %v771
        %v773 = vmul.f32 %v740, 1.442695
        %v774 = vpow.pop %v773
        %v775 = vmul.f32 %v741, 1.442695
        %v776 = vpow.pop %v775
        %v777 = vmul.f32 %v742, 1.442695
        %v778 = vpow.pop %v777
        %v779 = vmul.f32 %v743, 1.442695
        %v780 = vpow.pop %v779
        %v781 = vmul.f32 %v744, 1.442695
        %v782 = vpow.pop %v781
        %v783 = vmul.f32 %v745, 1.442695
        %v784 = vpow.pop %v783
        %v785 = vmul.f32 %v746, 1.442695
        %v786 = vpow.pop %v785
        %v787 = vmul.f32 %v747, 1.442695
        %v788 = vpow.pop %v787
        %v789 = vmul.f32 %v748, 1.442695
        %v790 = vpow.pop %v789
        %v791 = vmul.f32 %v749, 1.442695
        %v792 = vpow.pop %v791
        %v793 = vmul.f32 %v750, 1.442695
        %v794 = vpow.pop %v793
        %v795 = vmul.f32 %v751, 1.442695
        %v796 = vpow.pop %v795
        %v797 = vmul.f32 %v752, 1.442695
        %v798 = vpow.pop %v797
        %v799 = vmul.f32 %v753, 1.442695
        %v800 = vpow.pop %v799
        %v801 = vmul.f32 %v754, 1.442695
        %v802 = vpow.pop %v801
        %v803 = vmul.f32 %v755, 1.442695
        %v804 = vpow.pop %v803
        %v805 = vmul.f32 %v756, 1.442695
        %v806 = vpow.pop %v805
        %v807 = vmul.f32 %v757, 1.442695
        %v808 = vpow.pop %v807
        %v809 = vmul.f32 %v758, 1.442695
        %v810 = vpow.pop %v809
        %v811 = vmul.f32 %v759, 1.442695
        %v812 = vpow.pop %v811
        %v813 = vmul.f32 %v760, 1.442695
        %v814 = vpow.pop %v813
        %v815 = vmul.f32 %v761, 1.442695
        %v816 = vpow.pop %v815
        %v817 = vmul.f32 %v762, 1.442695
        %v818 = vpow.pop %v817
        %v819 = vmul.f32 %v763, 1.442695
        %v820 = vpow.pop %v819
        %v821 = vmul.f32 %v764, 1.442695
        %v822 = vpow.pop %v821
        %v823 = vmul.f32 %v765, 1.442695
        %v824 = vpow.pop %v823
        %v825 = vmul.f32 %v766, 1.442695
        %v826 = vpow.pop %v825
        %v827 = vmul.f32 %v767, 1.442695
        %v828 = vpow.pop %v827
        %v829 = vmul.f32 %v768, 1.442695
        %v830 = vpow.pop %v829
        %v831 = vmul.f32 %v769, 1.442695
        %v832 = vpow.pop %v831
        %v833 = vmul.f32 %v770, 1.442695
        %v834 = vpow.pop %v833
        %v835 = vadd.f32 %v772, 1.0
        %v836 = vadd.f32 %v774, 1.0
        %v837 = vadd.f32 %v776, 1.0
        %v838 = vadd.f32 %v778, 1.0
        %v839 = vadd.f32 %v780, 1.0
        %v840 = vadd.f32 %v782, 1.0
        %v841 = vadd.f32 %v784, 1.0
        %v842 = vadd.f32 %v786, 1.0
        %v843 = vadd.f32 %v788, 1.0
        %v844 = vadd.f32 %v790, 1.0
        %v845 = vadd.f32 %v792, 1.0
        %v846 = vadd.f32 %v794, 1.0
        %v847 = vadd.f32 %v796, 1.0
        %v848 = vadd.f32 %v798, 1.0
        %v849 = vadd.f32 %v800, 1.0
        %v850 = vadd.f32 %v802, 1.0
        %v851 = vadd.f32 %v804, 1.0
        %v852 = vadd.f32 %v806, 1.0
        %v853 = vadd.f32 %v808, 1.0
        %v854 = vadd.f32 %v810, 1.0
        %v855 = vadd.f32 %v812, 1.0
        %v856 = vadd.f32 %v814, 1.0
        %v857 = vadd.f32 %v816, 1.0
        %v858 = vadd.f32 %v818, 1.0
        %v859 = vadd.f32 %v820, 1.0
        %v860 = vadd.f32 %v822, 1.0
        %v861 = vadd.f32 %v824, 1.0
        %v862 = vadd.f32 %v826, 1.0
        %v863 = vadd.f32 %v828, 1.0
        %v864 = vadd.f32 %v830, 1.0
        %v865 = vadd.f32 %v832, 1.0
        %v866 = vadd.f32 %v834, 1.0
        %v867 = vrcp.pop %v835
        %v868 = vmul.f32 1.0, %v867
        %v869 = vrcp.pop %v836
        %v870 = vmul.f32 1.0, %v869
        %v871 = vrcp.pop %v837
        %v872 = vmul.f32 1.0, %v871
        %v873 = vrcp.pop %v838
        %v874 = vmul.f32 1.0, %v873
        %v875 = vrcp.pop %v839
        %v876 = vmul.f32 1.0, %v875
        %v877 = vrcp.pop %v840
        %v878 = vmul.f32 1.0, %v877
        %v879 = vrcp.pop %v841
        %v880 = vmul.f32 1.0, %v879
        %v881 = vrcp.pop %v842
        %v882 = vmul.f32 1.0, %v881
        %v883 = vrcp.pop %v843
        %v884 = vmul.f32 1.0, %v883
        %v885 = vrcp.pop %v844
        %v886 = vmul.f32 1.0, %v885
        %v887 = vrcp.pop %v845
        %v888 = vmul.f32 1.0, %v887
        %v889 = vrcp.pop %v846
        %v890 = vmul.f32 1.0, %v889
        %v891 = vrcp.pop %v847
        %v892 = vmul.f32 1.0, %v891
        %v893 = vrcp.pop %v848
        %v894 = vmul.f32 1.0, %v893
        %v895 = vrcp.pop %v849
        %v896 = vmul.f32 1.0, %v895
        %v897 = vrcp.pop %v850
        %v898 = vmul.f32 1.0, %v897
        %v899 = vrcp.pop %v851
        %v900 = vmul.f32 1.0, %v899
        %v901 = vrcp.pop %v852
        %v902 = vmul.f32 1.0, %v901
        %v903 = vrcp.pop %v853
        %v904 = vmul.f32 1.0, %v903
        %v905 = vrcp.pop %v854
        %v906 = vmul.f32 1.0, %v905
        %v907 = vrcp.pop %v855
        %v908 = vmul.f32 1.0, %v907
        %v909 = vrcp.pop %v856
        %v910 = vmul.f32 1.0, %v909
        %v911 = vrcp.pop %v857
        %v912 = vmul.f32 1.0, %v911
        %v913 = vrcp.pop %v858
        %v914 = vmul.f32 1.0, %v913
        %v915 = vrcp.pop %v859
        %v916 = vmul.f32 1.0, %v915
        %v917 = vrcp.pop %v860
        %v918 = vmul.f32 1.0, %v917
        %v919 = vrcp.pop %v861
        %v920 = vmul.f32 1.0, %v919
        %v921 = vrcp.pop %v862
        %v922 = vmul.f32 1.0, %v921
        %v923 = vrcp.pop %v863
        %v924 = vmul.f32 1.0, %v923
        %v925 = vrcp.pop %v864
        %v926 = vmul.f32 1.0, %v925
        %v927 = vrcp.pop %v865
        %v928 = vmul.f32 1.0, %v927
        %v929 = vrcp.pop %v866
        %v930 = vmul.f32 1.0, %v929
        %v931 = vmul.f32 %v548, %v868
        %v932 = vmul.f32 %v550, %v870
        %v933 = vmul.f32 %v552, %v872
        %v934 = vmul.f32 %v554, %v874
        %v935 = vmul.f32 %v558, %v876
        %v936 = vmul.f32 %v560, %v878
        %v937 = vmul.f32 %v562, %v880
        %v938 = vmul.f32 %v564, %v882
        %v939 = vmul.f32 %v568, %v884
        %v940 = vmul.f32 %v570, %v886
        %v941 = vmul.f32 %v572, %v888
        %v942 = vmul.f32 %v574, %v890
        %v943 = vmul.f32 %v578, %v892
        %v944 = vmul.f32 %v580, %v894
        %v945 = vmul.f32 %v582, %v896
        %v946 = vmul.f32 %v584, %v898
        %v947 = vmul.f32 %v588, %v900
        %v948 = vmul.f32 %v590, %v902
        %v949 = vmul.f32 %v592, %v904
        %v950 = vmul.f32 %v594, %v906
        %v951 = vmul.f32 %v598, %v908
        %v952 = vmul.f32 %v600, %v910
        %v953 = vmul.f32 %v602, %v912
        %v954 = vmul.f32 %v604, %v914
        %v955 = vmul.f32 %v608, %v916
        %v956 = vmul.f32 %v610, %v918
        %v957 = vmul.f32 %v612, %v920
        %v958 = vmul.f32 %v614, %v922
        %v959 = vmul.f32 %v618, %v924
        %v960 = vmul.f32 %v620, %v926
        %v961 = vmul.f32 %v622, %v928
        %v962 = vmul.f32 %v624, %v930
        %v963 = vmul.f32 %v931, %v661
        %v964 = vmul.f32 %v932, %v663
        %v965 = vmul.f32 %v933, %v665
        %v966 = vmul.f32 %v934, %v667
        %v967 = vmul.f32 %v935, %v671
        %v968 = vmul.f32 %v936, %v673
        %v969 = vmul.f32 %v937, %v675
        %v970 = vmul.f32 %v938, %v677
        %v971 = vmul.f32 %v939, %v681
        %v972 = vmul.f32 %v940, %v683
        %v973 = vmul.f32 %v941, %v685
        %v974 = vmul.f32 %v942, %v687
        %v975 = vmul.f32 %v943, %v691
        %v976 = vmul.f32 %v944, %v693
        %v977 = vmul.f32 %v945, %v695
        %v978 = vmul.f32 %v946, %v697
        %v979 = vmul.f32 %v947, %v701
        %v980 = vmul.f32 %v948, %v703
        %v981 = vmul.f32 %v949, %v705
        %v982 = vmul.f32 %v950, %v707
        %v983 = vmul.f32 %v951, %v711
        %v984 = vmul.f32 %v952, %v713
        %v985 = vmul.f32 %v953, %v715
        %v986 = vmul.f32 %v954, %v717
        %v987 = vmul.f32 %v955, %v721
        %v988 = vmul.f32 %v956, %v723
        %v989 = vmul.f32 %v957, %v725
        %v990 = vmul.f32 %v958, %v727
        %v991 = vmul.f32 %v959, %v731
        %v992 = vmul.f32 %v960, %v733
        %v993 = vmul.f32 %v961, %v735
        %v994 = vmul.f32 %v962, %v737
        %v995 = vpack.c.bf16 %v965, %v963
        %v996 = vpack.c.bf16 %v966, %v964
        %v997 = vpack.c.bf16 %v969, %v967
        %v998 = vpack.c.bf16 %v970, %v968
        %v999 = vpack.c.bf16 %v973, %v971
        %v1000 = vpack.c.bf16 %v974, %v972
        %v1001 = vpack.c.bf16 %v977, %v975
        %v1002 = vpack.c.bf16 %v978, %v976
        %v1003 = vpack.c.bf16 %v981, %v979
        %v1004 = vpack.c.bf16 %v982, %v980
        %v1005 = vpack.c.bf16 %v985, %v983
        %v1006 = vpack.c.bf16 %v986, %v984
        %v1007 = vpack.c.bf16 %v989, %v987
        %v1008 = vpack.c.bf16 %v990, %v988
        %v1009 = vpack.c.bf16 %v993, %v991
        %v1010 = vpack.c.bf16 %v994, %v992
        %v1011 = vld [vmem:[%s231] sm:$0xf]
        %v1012 = vld [vmem:[%s231 + $0x4] sm:$0xf]
        %v1013 = vld [vmem:[%s231 + $0x8] sm:$0xf]
        %v1014 = vld [vmem:[%s231 + $0xc] sm:$0xf]
        %v1015 = vld [vmem:[%s231 + $0x10] sm:$0xf]
        %v1016 = vld [vmem:[%s231 + $0x14] sm:$0xf]
        %v1017 = vld [vmem:[%s231 + $0x18] sm:$0xf]
        %v1018 = vld [vmem:[%s231 + $0x1c] sm:$0xf]
        %v1019 = vld [vmem:[%s231 + $0x20] sm:$0xf]
        %v1020 = vld [vmem:[%s231 + $0x24] sm:$0xf]
        %v1021 = vld [vmem:[%s231 + $0x28] sm:$0xf]
        %v1022 = vld [vmem:[%s231 + $0x2c] sm:$0xf]
        %v1023 = vld [vmem:[%s231 + $0x30] sm:$0xf]
        %v1024 = vld [vmem:[%s231 + $0x34] sm:$0xf]
        %v1025 = vld [vmem:[%s231 + $0x38] sm:$0xf]
        %v1026 = vld [vmem:[%s231 + $0x3c] sm:$0xf]
        %v1027 = vld [vmem:[%s231 + $0x40] sm:$0xf]
        %v1028 = vld [vmem:[%s231 + $0x44] sm:$0xf]
        %v1029 = vld [vmem:[%s231 + $0x48] sm:$0xf]
        %v1030 = vld [vmem:[%s231 + $0x4c] sm:$0xf]
        %v1031 = vld [vmem:[%s231 + $0x50] sm:$0xf]
        %v1032 = vld [vmem:[%s231 + $0x54] sm:$0xf]
        %v1033 = vld [vmem:[%s231 + $0x58] sm:$0xf]
        %v1034 = vld [vmem:[%s231 + $0x5c] sm:$0xf]
        %v1035 = vld [vmem:[%s231 + $0x60] sm:$0xf]
        %v1036 = vld [vmem:[%s231 + $0x64] sm:$0xf]
        %v1037 = vld [vmem:[%s231 + $0x68] sm:$0xf]
        %v1038 = vld [vmem:[%s231 + $0x6c] sm:$0xf]
        %v1039 = vld [vmem:[%s231 + $0x70] sm:$0xf]
        %v1040 = vld [vmem:[%s231 + $0x74] sm:$0xf]
        %v1041 = vld [vmem:[%s231 + $0x78] sm:$0xf]
        %v1042 = vld [vmem:[%s231 + $0x7c] sm:$0xf]
        %v1075 = vunpack.c.l.b16 %v1011
        %v1076 = vunpack.c.l.b16 %v1012
        %v1077 = vunpack.c.l.b16 %v1013
        %v1078 = vunpack.c.l.b16 %v1014
        %v1079 = vunpack.c.l.b16 %v1015
        %v1080 = vunpack.c.l.b16 %v1016
        %v1081 = vunpack.c.l.b16 %v1017
        %v1082 = vunpack.c.l.b16 %v1018
        %v1083 = vunpack.c.l.b16 %v1019
        %v1084 = vunpack.c.l.b16 %v1020
        %v1085 = vunpack.c.l.b16 %v1021
        %v1086 = vunpack.c.l.b16 %v1022
        %v1087 = vunpack.c.l.b16 %v1023
        %v1088 = vunpack.c.l.b16 %v1024
        %v1089 = vunpack.c.l.b16 %v1025
        %v1090 = vunpack.c.l.b16 %v1026
        %v1091 = vunpack.c.l.b16 %v1027
        %v1092 = vunpack.c.l.b16 %v1028
        %v1093 = vunpack.c.l.b16 %v1029
        %v1094 = vunpack.c.l.b16 %v1030
        %v1095 = vunpack.c.l.b16 %v1031
        %v1096 = vunpack.c.l.b16 %v1032
        %v1097 = vunpack.c.l.b16 %v1033
        %v1098 = vunpack.c.l.b16 %v1034
        %v1099 = vunpack.c.l.b16 %v1035
        %v1100 = vunpack.c.l.b16 %v1036
        %v1101 = vunpack.c.l.b16 %v1037
        %v1102 = vunpack.c.l.b16 %v1038
        %v1103 = vunpack.c.l.b16 %v1039
        %v1104 = vunpack.c.l.b16 %v1040
        %v1105 = vunpack.c.l.b16 %v1041
        %v1106 = vunpack.c.l.b16 %v1042
        %v1107 = vpack.c.b16 %v1076, %v1075
        %v1108 = vpack.c.b16 %v1078, %v1077
        %v1109 = vpack.c.b16 %v1080, %v1079
        %v1110 = vpack.c.b16 %v1082, %v1081
        %v1111 = vpack.c.b16 %v1084, %v1083
        %v1112 = vpack.c.b16 %v1086, %v1085
        %v1113 = vpack.c.b16 %v1088, %v1087
        %v1114 = vpack.c.b16 %v1090, %v1089
        %v1115 = vpack.c.b16 %v1092, %v1091
        %v1116 = vpack.c.b16 %v1094, %v1093
        %v1117 = vpack.c.b16 %v1096, %v1095
        %v1118 = vpack.c.b16 %v1098, %v1097
        %v1119 = vpack.c.b16 %v1100, %v1099
        %v1120 = vpack.c.b16 %v1102, %v1101
        %v1121 = vpack.c.b16 %v1104, %v1103
        %v1122 = vpack.c.b16 %v1106, %v1105
        %1139 = vmatprep.subr.bf16.mxu0 0
        %1140 = vmatpush1.bf16.msra.mxu0 %v1107
        %1141 = vmatprep.subr.bf16.mxu0 0
        %1142 = vmatpush1.bf16.msra.mxu0 %v1108
        %1143 = vmatprep.subr.bf16.mxu0 0
        %1144 = vmatpush1.bf16.msra.mxu0 %v1109
        %1145 = vmatprep.subr.bf16.mxu0 0
        %1146 = vmatpush1.bf16.msra.mxu0 %v1110
        %1147 = vmatprep.subr.bf16.mxu0 0
        %1148 = vmatpush1.bf16.msra.mxu0 %v1111
        %1149 = vmatprep.subr.bf16.mxu0 0
        %1150 = vmatpush1.bf16.msra.mxu0 %v1112
        %1151 = vmatprep.subr.bf16.mxu0 0
        %1152 = vmatpush1.bf16.msra.mxu0 %v1113
        %1153 = vmatprep.subr.bf16.mxu0 0
        %1154 = vmatpush1.bf16.msra.mxu0 %v1114
        %1155 = vmatprep.subr.bf16.mxu0 0
        %1156 = vmatpush1.bf16.msra.mxu0 %v1115
        %1157 = vmatprep.subr.bf16.mxu0 0
        %1158 = vmatpush1.bf16.msra.mxu0 %v1116
        %1159 = vmatprep.subr.bf16.mxu0 0
        %1160 = vmatpush1.bf16.msra.mxu0 %v1117
        %1161 = vmatprep.subr.bf16.mxu0 0
        %1162 = vmatpush1.bf16.msra.mxu0 %v1118
        %1163 = vmatprep.subr.bf16.mxu0 0
        %1164 = vmatpush1.bf16.msra.mxu0 %v1119
        %1165 = vmatprep.subr.bf16.mxu0 0
        %1166 = vmatpush1.bf16.msra.mxu0 %v1120
        %1167 = vmatprep.subr.bf16.mxu0 0
        %1168 = vmatpush1.bf16.msra.mxu0 %v1121
        %1169 = vmatprep.subr.bf16.mxu0 0
        %1170 = vmatpush1.bf16.msra.mxu0 %v1122
        %1171 = vmatprep.mubr.bf16.mxu0 %v996
        %1172 = vmatmul.mubr.bf16.gmra.mrb[0].mxu0 %v995
        %v1173 = vpop.f32.mrb[0].mxu0
        %v1174 = vadd.f32 0.0, %v1173
        %v1175 = vpop.f32.mrb[0].mxu0
        %v1176 = vpop.f32.mrb[0].mxu0
        %v1177 = vadd.f32 0.0, %v1176
        %v1178 = vpop.f32.mrb[0].mxu0
        %1179 = vmatprep.mubr.bf16.mxu0 %v998
        %1180 = vmatmul.mubr.bf16.gmra.mrb[0].mxu0 %v997
        %v1181 = vpop.f32.mrb[0].mxu0
        %v1182 = vadd.f32 0.0, %v1181
        %v1183 = vpop.f32.mrb[0].mxu0
        %v1184 = vpop.f32.mrb[0].mxu0
        %v1185 = vadd.f32 0.0, %v1184
        %v1186 = vpop.f32.mrb[0].mxu0
        %1187 = vmatprep.mubr.bf16.mxu0 %v1000
        %1188 = vmatmul.mubr.bf16.gmra.mrb[0].mxu0 %v999
        %v1189 = vpop.f32.mrb[0].mxu0
        %v1190 = vadd.f32 0.0, %v1189
        %v1191 = vpop.f32.mrb[0].mxu0
        %v1192 = vpop.f32.mrb[0].mxu0
        %v1193 = vadd.f32 0.0, %v1192
        %v1194 = vpop.f32.mrb[0].mxu0
        %1195 = vmatprep.mubr.bf16.mxu0 %v1002
        %1196 = vmatmul.mubr.bf16.gmra.mrb[0].mxu0 %v1001
        %v1197 = vpop.f32.mrb[0].mxu0
        %v1198 = vadd.f32 0.0, %v1197
        %v1199 = vpop.f32.mrb[0].mxu0
        %v1200 = vpop.f32.mrb[0].mxu0
        %v1201 = vadd.f32 0.0, %v1200
        %v1202 = vpop.f32.mrb[0].mxu0
        %1203 = vmatprep.mubr.bf16.mxu0 %v1004
        %1204 = vmatmul.mubr.bf16.gmra.mrb[0].mxu0 %v1003
        %v1205 = vpop.f32.mrb[0].mxu0
        %v1206 = vadd.f32 0.0, %v1205
        %v1207 = vpop.f32.mrb[0].mxu0
        %v1208 = vpop.f32.mrb[0].mxu0
        %v1209 = vadd.f32 0.0, %v1208
        %v1210 = vpop.f32.mrb[0].mxu0
        %1211 = vmatprep.mubr.bf16.mxu0 %v1006
        %1212 = vmatmul.mubr.bf16.gmra.mrb[0].mxu0 %v1005
        %v1213 = vpop.f32.mrb[0].mxu0
        %v1214 = vadd.f32 0.0, %v1213
        %v1215 = vpop.f32.mrb[0].mxu0
        %v1216 = vpop.f32.mrb[0].mxu0
        %v1217 = vadd.f32 0.0, %v1216
        %v1218 = vpop.f32.mrb[0].mxu0
        %1219 = vmatprep.mubr.bf16.mxu0 %v1008
        %1220 = vmatmul.mubr.bf16.gmra.mrb[0].mxu0 %v1007
        %v1221 = vpop.f32.mrb[0].mxu0
        %v1222 = vadd.f32 0.0, %v1221
        %v1223 = vpop.f32.mrb[0].mxu0
        %v1224 = vpop.f32.mrb[0].mxu0
        %v1225 = vadd.f32 0.0, %v1224
        %v1226 = vpop.f32.mrb[0].mxu0
        %1227 = vmatprep.mubr.bf16.mxu0 %v1010
        %1228 = vmatmul.mubr.bf16.gmra.mrb[0].mxu0 %v1009
        %v1229 = vpop.f32.mrb[0].mxu0
        %v1230 = vadd.f32 0.0, %v1229
        %v1231 = vpop.f32.mrb[0].mxu0
        %v1232 = vpop.f32.mrb[0].mxu0
        %v1233 = vadd.f32 0.0, %v1232
        %v1234 = vpop.f32.mrb[0].mxu0
        %1235 = vdwg.mxu0
        %p1236 = scmp.eq.s32.totalorder %s24, 0
        // Predicated region
        $region45: #{tpu_custom_call.1} parent=31 // pred_check
          %p1237 = pneg %p1236
        $region46: #{tpu_custom_call.1} parent=31 // pred_check_branch
          %1239 = sbr.rel (%p1237) target = $region48
        $region47: #{tpu_custom_call.1} parent=31 // pred_region
          %1240 = vst [vmem:[#allocation2] sm:$0xff] %v1174
          %1241 = vst [vmem:[#allocation2 + $0x8] sm:$0xff] %v1177
          %1242 = vst [vmem:[#allocation2 + $0x10] sm:$0xff] %v1182
          %1243 = vst [vmem:[#allocation2 + $0x18] sm:$0xff] %v1185
          %1244 = vst [vmem:[#allocation2 + $0x20] sm:$0xff] %v1190
          %1245 = vst [vmem:[#allocation2 + $0x28] sm:$0xff] %v1193
          %1246 = vst [vmem:[#allocation2 + $0x30] sm:$0xff] %v1198
          %1247 = vst [vmem:[#allocation2 + $0x38] sm:$0xff] %v1201
          %1248 = vst [vmem:[#allocation2 + $0x40] sm:$0xff] %v1206
          %1249 = vst [vmem:[#allocation2 + $0x48] sm:$0xff] %v1209
          %1250 = vst [vmem:[#allocation2 + $0x50] sm:$0xff] %v1214
          %1251 = vst [vmem:[#allocation2 + $0x58] sm:$0xff] %v1217
          %1252 = vst [vmem:[#allocation2 + $0x60] sm:$0xff] %v1222
          %1253 = vst [vmem:[#allocation2 + $0x68] sm:$0xff] %v1225
          %1254 = vst [vmem:[#allocation2 + $0x70] sm:$0xff] %v1230
          %1255 = vst [vmem:[#allocation2 + $0x78] sm:$0xff] %v1233
        $region48: #{tpu_custom_call.1} parent=31 // pred_fallthru
          _
        %p1256 = scmp.gt.s32.totalorder %s24, 0
        // Predicated region
        $region49: #{tpu_custom_call.1} parent=31 // pred_check
          %p1257 = pneg %p1256
        $region50: #{tpu_custom_call.1} parent=31 // pred_check_branch
          %1259 = sbr.rel (%p1257) target = $region52
        $region51: #{tpu_custom_call.1} parent=31 // pred_region
          %v1260 = vld [vmem:[#allocation2] sm:$0xff]
          %v1261 = vld [vmem:[#allocation2 + $0x8] sm:$0xff]
          %v1262 = vld [vmem:[#allocation2 + $0x10] sm:$0xff]
          %v1263 = vld [vmem:[#allocation2 + $0x18] sm:$0xff]
          %v1264 = vld [vmem:[#allocation2 + $0x20] sm:$0xff]
          %v1265 = vld [vmem:[#allocation2 + $0x28] sm:$0xff]
          %v1266 = vld [vmem:[#allocation2 + $0x30] sm:$0xff]
          %v1267 = vld [vmem:[#allocation2 + $0x38] sm:$0xff]
          %v1268 = vld [vmem:[#allocation2 + $0x40] sm:$0xff]
          %v1269 = vld [vmem:[#allocation2 + $0x48] sm:$0xff]
          %v1270 = vld [vmem:[#allocation2 + $0x50] sm:$0xff]
          %v1271 = vld [vmem:[#allocation2 + $0x58] sm:$0xff]
          %v1272 = vld [vmem:[#allocation2 + $0x60] sm:$0xff]
          %v1273 = vld [vmem:[#allocation2 + $0x68] sm:$0xff]
          %v1274 = vld [vmem:[#allocation2 + $0x70] sm:$0xff]
          %v1275 = vld [vmem:[#allocation2 + $0x78] sm:$0xff]
          %v1276 = vadd.f32 %v1260, %v1174
          %v1277 = vadd.f32 %v1261, %v1177
          %v1278 = vadd.f32 %v1262, %v1182
          %v1279 = vadd.f32 %v1263, %v1185
          %v1280 = vadd.f32 %v1264, %v1190
          %v1281 = vadd.f32 %v1265, %v1193
          %v1282 = vadd.f32 %v1266, %v1198
          %v1283 = vadd.f32 %v1267, %v1201
          %v1284 = vadd.f32 %v1268, %v1206
          %v1285 = vadd.f32 %v1269, %v1209
          %v1286 = vadd.f32 %v1270, %v1214
          %v1287 = vadd.f32 %v1271, %v1217
          %v1288 = vadd.f32 %v1272, %v1222
          %v1289 = vadd.f32 %v1273, %v1225
          %v1290 = vadd.f32 %v1274, %v1230
          %v1291 = vadd.f32 %v1275, %v1233
          %1292 = vst [vmem:[#allocation2] sm:$0xff] %v1276
          %1293 = vst [vmem:[#allocation2 + $0x8] sm:$0xff] %v1277
          %1294 = vst [vmem:[#allocation2 + $0x10] sm:$0xff] %v1278
          %1295 = vst [vmem:[#allocation2 + $0x18] sm:$0xff] %v1279
          %1296 = vst [vmem:[#allocation2 + $0x20] sm:$0xff] %v1280
          %1297 = vst [vmem:[#allocation2 + $0x28] sm:$0xff] %v1281
          %1298 = vst [vmem:[#allocation2 + $0x30] sm:$0xff] %v1282
          %1299 = vst [vmem:[#allocation2 + $0x38] sm:$0xff] %v1283
          %1300 = vst [vmem:[#allocation2 + $0x40] sm:$0xff] %v1284
          %1301 = vst [vmem:[#allocation2 + $0x48] sm:$0xff] %v1285
          %1302 = vst [vmem:[#allocation2 + $0x50] sm:$0xff] %v1286
          %1303 = vst [vmem:[#allocation2 + $0x58] sm:$0xff] %v1287
          %1304 = vst [vmem:[#allocation2 + $0x60] sm:$0xff] %v1288
          %1305 = vst [vmem:[#allocation2 + $0x68] sm:$0xff] %v1289
          %1306 = vst [vmem:[#allocation2 + $0x70] sm:$0xff] %v1290
          %1307 = vst [vmem:[#allocation2 + $0x78] sm:$0xff] %v1291
        $region52: #{tpu_custom_call.1} parent=31 // pred_fallthru
          _
        %p1308 = scmp.eq.s32.totalorder %s24, 1
        // Predicated region
        $region53: #{tpu_custom_call.1} parent=31 // pred_check
          %p1309 = pneg %p1308
        $region54: #{tpu_custom_call.1} parent=31 // pred_check_branch
          %1311 = sbr.rel (%p1309) target = $region56
        $region55: #{tpu_custom_call.1} parent=31 // pred_region
          %v1312 = vld [vmem:[#allocation2] sm:$0xff]
          %v1313 = vld [vmem:[#allocation2 + $0x8] sm:$0xff]
          %v1314 = vld [vmem:[#allocation2 + $0x10] sm:$0xff]
          %v1315 = vld [vmem:[#allocation2 + $0x18] sm:$0xff]
          %v1316 = vld [vmem:[#allocation2 + $0x20] sm:$0xff]
          %v1317 = vld [vmem:[#allocation2 + $0x28] sm:$0xff]
          %v1318 = vld [vmem:[#allocation2 + $0x30] sm:$0xff]
          %v1319 = vld [vmem:[#allocation2 + $0x38] sm:$0xff]
          %v1320 = vld [vmem:[#allocation2 + $0x40] sm:$0xff]
          %v1321 = vld [vmem:[#allocation2 + $0x48] sm:$0xff]
          %v1322 = vld [vmem:[#allocation2 + $0x50] sm:$0xff]
          %v1323 = vld [vmem:[#allocation2 + $0x58] sm:$0xff]
          %v1324 = vld [vmem:[#allocation2 + $0x60] sm:$0xff]
          %v1325 = vld [vmem:[#allocation2 + $0x68] sm:$0xff]
          %v1326 = vld [vmem:[#allocation2 + $0x70] sm:$0xff]
          %v1327 = vld [vmem:[#allocation2 + $0x78] sm:$0xff]
          %1328 = vst [vmem:[#allocation9] sm:$0xff] %v1312
          %1329 = vst [vmem:[#allocation9 + $0x8] sm:$0xff] %v1313
          %1330 = vst [vmem:[#allocation9 + $0x10] sm:$0xff] %v1314
          %1331 = vst [vmem:[#allocation9 + $0x18] sm:$0xff] %v1315
          %1332 = vst [vmem:[#allocation9 + $0x20] sm:$0xff] %v1316
          %1333 = vst [vmem:[#allocation9 + $0x28] sm:$0xff] %v1317
          %1334 = vst [vmem:[#allocation9 + $0x30] sm:$0xff] %v1318
          %1335 = vst [vmem:[#allocation9 + $0x38] sm:$0xff] %v1319
          %1336 = vst [vmem:[#allocation9 + $0x40] sm:$0xff] %v1320
          %1337 = vst [vmem:[#allocation9 + $0x48] sm:$0xff] %v1321
          %1338 = vst [vmem:[#allocation9 + $0x50] sm:$0xff] %v1322
          %1339 = vst [vmem:[#allocation9 + $0x58] sm:$0xff] %v1323
          %1340 = vst [vmem:[#allocation9 + $0x60] sm:$0xff] %v1324
          %1341 = vst [vmem:[#allocation9 + $0x68] sm:$0xff] %v1325
          %1342 = vst [vmem:[#allocation9 + $0x70] sm:$0xff] %v1326
          %1343 = vst [vmem:[#allocation9 + $0x78] sm:$0xff] %v1327
        $region56: #{tpu_custom_call.1} parent=31 // pred_fallthru
          _
        // Predicated region
        $region57: #{tpu_custom_call.1} parent=31 // pred_check
          %p1344 = pneg %p127
        $region58: #{tpu_custom_call.1} parent=31 // pred_check_branch
          %1346 = sbr.rel (%p1344) target = $region60
        $region59: #{tpu_custom_call.1} parent=31 // pred_region
          %s1347 = smul.u32 16, %s23
          %s1349 = ssub.s32 2048, 2048
          %1350 = vsyncadd [#allocation5], %s1349
          %s1351 = smul.addr %s1347, 128
          %s1352 = scalar_lea.hbm %s3, %s1351
          %s1353 = sshll.u32 [#allocation9], 4
          %s1354 = int_to_ptr.vmem [resolvable:$true] %s1353
          %1359 = dma.vmem_to_hbm [thread:$0]  %s1354, 2048, %s1352, [#allocation5], 128, 128, 8
        $region60: #{tpu_custom_call.1} parent=31 // pred_fallthru
          _
        // Predicated region
        $region61: #{tpu_custom_call.1} parent=31 // pred_check
          %p1360 = pneg %p127
        $region62: #{tpu_custom_call.1} parent=31 // pred_check_branch
          %1362 = sbr.rel (%p1360) target = $region64
        $region63: #{tpu_custom_call.1} parent=31 // pred_region
          %1363 = dma.done [#allocation5], 2048
        $region64: #{tpu_custom_call.1} parent=31 // pred_fallthru
          _
      $region32: #{tpu_custom_call.1} parent=5 // pred_fallthru
        _
      %p1364 = scmp.le.s32.totalorder 2, %s14
      // Predicated region
      $region65: #{tpu_custom_call.1} parent=5 // pred_check
        %p1365 = pneg %p1364
      $region66: #{tpu_custom_call.1} parent=5 // pred_check_branch
        %1367 = sbr.rel (%p1365) target = $region68
      $region67: #{tpu_custom_call.1} parent=5 // pred_region
        %s1368 = ssub.s32 %s14, 2
      $region68: #{tpu_custom_call.1} parent=5 // pred_fallthru
        _
    $region6: #{tpu_custom_call.1} parent=1 // loop_footer
      %s18 = sadd.s32 1, %s14
    $region7: #{tpu_custom_call.1} parent=1 // loop_footer_branch
      %13 = sbr.rel target = $region3
    $region8: #{tpu_custom_call.1} parent=1 // loop_exit
      _
    %1369 = vsyncpa [#allocation4], 1
    %s1370 = scalar_lea.sflag [#allocation4], 1
    %1371 = vsyncpa %s1370, 1
    %1372 = vsyncpa [#allocation7], 1
    %s1373 = scalar_lea.sflag [#allocation7], 1
    %1374 = vsyncpa %s1373, 1
    %1375 = vsyncpa [#allocation5], 1
    %s1376 = scalar_lea.sflag [#allocation5], 1
    %1377 = vsyncpa %s1376, 1

</llo_original>
